<compile_context>
chip_gen: v7x
topology: tpu7x:2x2x1
jax: 0.10.0
libtpu: 0.0.40
codegen_flags: <defaults>
</compile_context>

<pallas_src>
import jax
import jax.numpy as jnp
from jax.experimental import pallas as pl
from jax.experimental.pallas import tpu as pltpu


def cfg_denoiser_kernel(sigma_ref, x_ref, he_ref, o_ref):
    # Fused CFG combine (exact algebraic fold for the linear synthetic model):
    #   u + (c - u) * cond_scale  ==  (h + e_blend) * sigma + x
    # he_ref already holds h + e_blend; sigma_ref is a per-row [B*C, 1] column.
    # One broadcast FMA + add on a full (8,128)-tiled, lane-dense block.
    o_ref[...] = he_ref[...] * sigma_ref[...] + x_ref[...]


def cfg_denoiser(x_nchw, sigma, uncond, cond, cond_scale, w, p):
    B, C, H, W = x_nchw.shape
    HW = H * W
    R = B * C  # merged batch*channel rows -> full sublane occupancy

    # Free contiguous view of NCHW -> [B*C, HW]; no transpose needed.
    x2d = x_nchw.reshape(R, HW).astype(jnp.float32)

    # Blended conditioning embedding (tiny, linear) in XLA:
    #   e_b = (mean_T(uncond_b) + cond_scale * (mean_T(cond_b) - mean_T(uncond_b))) @ P
    u_emb = jnp.mean(uncond, axis=1) @ p                    # [B, C]
    c_emb = jnp.mean(cond, axis=1) @ p                      # [B, C]
    e = u_emb + (c_emb - u_emb) * cond_scale                # [B, C]

    # 1x1-conv channel mix hoisted to the wrapper (C=4 is far below any MXU
    # tile; a kernel-side dot would be pure MXU-latency overhead).  The e bias
    # is folded into the einsum epilogue so no separate per-row e stream ever
    # reaches the kernel.
    h_e = jnp.einsum("kc,bkh->bch", w, x_nchw.reshape(B, C, HW)) + e[:, :, None]
    h_e = h_e.reshape(R, HW).astype(jnp.float32)

    # Per-row sigma column [B*C, 1] (row r = b*C + c -> sigma[b]).
    sigma_col = jnp.repeat(sigma.astype(jnp.float32), C).reshape(R, 1)

    # Lane-dense HW tiling: single step at demo shapes; 2048-lane blocks for
    # real latents (mem-bound sweet spot, unmasked vst, amortized step cost).
    if HW > 2048 and HW % 2048 == 0:
        hw_blk = 2048
    else:
        hw_blk = HW
    grid = (HW // hw_blk,)

    out = pl.pallas_call(
        cfg_denoiser_kernel,
        out_shape=jax.ShapeDtypeStruct((R, HW), jnp.float32),
        grid=grid,
        in_specs=[
            pl.BlockSpec((R, 1), lambda t: (0, 0)),        # sigma col (resident)
            pl.BlockSpec((R, hw_blk), lambda t: (0, t)),   # x
            pl.BlockSpec((R, hw_blk), lambda t: (0, t)),   # h + e_blend
        ],
        out_specs=pl.BlockSpec((R, hw_blk), lambda t: (0, t)),
        compiler_params=pltpu.CompilerParams(
            dimension_semantics=("parallel",)),
    )(sigma_col, x2d, h_e)

    return out.reshape(B, C, H, W)


# ------------------ pure-JAX reference (mirrors the torch forward) -----------
def _inner_model_ref(x_flat, sigma, cond_emb, w, p):
    h = x_flat @ w                                   # [2B, HW, C]
    emb = jnp.mean(cond_emb, axis=1) @ p             # [2B, C]
    return (h + emb[:, None, :]) * sigma[:, None, None] + x_flat


def cfg_denoiser_ref(x_nchw, sigma, uncond, cond, cond_scale, w, p):
    B, C, H, W = x_nchw.shape
    x_flat = jnp.transpose(x_nchw, (0, 2, 3, 1)).reshape(B, H * W, C)
    x_in = jnp.concatenate([x_flat] * 2)             # torch.cat([x] * 2)
    sigma_in = jnp.concatenate([sigma] * 2)          # torch.cat([sigma] * 2)
    cond_in = jnp.concatenate([uncond, cond])        # torch.cat([uncond, cond])
    den = _inner_model_ref(x_in, sigma_in, cond_in, w, p)
    u, c = den[:B], den[B:]                          # .chunk(2)
    out = u + (c - u) * cond_scale
    return jnp.transpose(out.reshape(B, H, W, C), (0, 3, 1, 2))


if __name__ == "__main__":
    B, C, H, W = 2, 4, 16, 16        # x: NCHW
    T, D = 8, 32                     # conditioning: [B, T, D]
    cond_scale = 7.5

    key = jax.random.PRNGKey(0)
    kx, ks, ku, kc, kw, kp = jax.random.split(key, 6)

    x = jax.random.normal(kx, (B, C, H, W), dtype=jnp.float32)
    sigma = jax.random.uniform(ks, (B,), dtype=jnp.float32, minval=0.1, maxval=2.0)
    uncond = jax.random.normal(ku, (B, T, D), dtype=jnp.float32)
    cond = jax.random.normal(kc, (B, T, D), dtype=jnp.float32)
    # deterministic synthetic inner-model parameters
    w = jax.random.normal(kw, (C, C), dtype=jnp.float32) * 0.1
    p = jax.random.normal(kp, (D, C), dtype=jnp.float32) * 0.1

    out = cfg_denoiser(x, sigma, uncond, cond, cond_scale, w, p)
    out = jax.block_until_ready(out)

    ref = cfg_denoiser_ref(x, sigma, uncond, cond, cond_scale, w, p)
    assert out.shape == (B, C, H, W)
    assert jnp.allclose(out, ref, atol=1e-4, rtol=1e-4), "mismatch vs reference"

    print("KERNEL_OK")
</pallas_src>

<mosaic_0001>
module attributes {stable_mosaic.version = 11 : i64} {
  func.func @cfg_denoiser_kernel(%arg0: i32, %arg1: memref<8x1xf32, #tpu.memory_space<vmem>>, %arg2: memref<8x256xf32, #tpu.memory_space<vmem>>, %arg3: memref<8x256xf32, #tpu.memory_space<vmem>>, %arg4: memref<8x256xf32, #tpu.memory_space<vmem>>) attributes {dimension_semantics = [#tpu.dimension_semantics<parallel>], iteration_bounds = array<i64: 1>, scalar_prefetch = 0 : i64, scratch_operands = 0 : i64, tpu.core_type = #tpu.core_type<tc>, window_params = [{pipeline_mode = #tpu.pipeline_mode<synchronous>, transform_indices = @transform_0, window_bounds = array<i64: 8, 1>}, {transform_indices = @transform_1, window_bounds = array<i64: 8, 256>}, {transform_indices = @transform_2, window_bounds = array<i64: 8, 256>}, {transform_indices = @transform_3, window_bounds = array<i64: 8, 256>}]} {
    %c0 = arith.constant 0 : index
    %c0_0 = arith.constant 0 : index
    %0 = vector.load %arg3[%c0, %c0_0] : memref<8x256xf32, #tpu.memory_space<vmem>>, vector<8x256xf32>
    %c0_1 = arith.constant 0 : index
    %c0_2 = arith.constant 0 : index
    %1 = vector.load %arg1[%c0_1, %c0_2] : memref<8x1xf32, #tpu.memory_space<vmem>>, vector<8x1xf32>
    %2 = vector.broadcast %1 : vector<8x1xf32> to vector<8x256xf32>
    %3 = arith.mulf %0, %2 : vector<8x256xf32>
    %c0_3 = arith.constant 0 : index
    %c0_4 = arith.constant 0 : index
    %4 = vector.load %arg2[%c0_3, %c0_4] : memref<8x256xf32, #tpu.memory_space<vmem>>, vector<8x256xf32>
    %5 = arith.addf %3, %4 : vector<8x256xf32>
    %c0_5 = arith.constant 0 : index
    %c0_6 = arith.constant 0 : index
    %6 = vector.load %arg4[%c0_5, %c0_6] : memref<8x256xf32, #tpu.memory_space<vmem>>, vector<8x256xf32>
    tpu.vector_store %arg4[%c0_5, %c0_6], %5 {strides = array<i32>} : memref<8x256xf32, #tpu.memory_space<vmem>>, vector<8x256xf32>,
    return
  }
  func.func @transform_0(%arg0: i32) -> (i32, i32) {
    %c0_i32 = arith.constant 0 : i32
    %c0_i32_0 = arith.constant 0 : i32
    %c0_i32_1 = arith.constant 0 : i32
    return %c0_i32, %c0_i32_0 : i32, i32
  }
  func.func @transform_1(%arg0: i32) -> (i32, i32) {
    %c0_i32 = arith.constant 0 : i32
    %c0_i32_0 = arith.constant 0 : i32
    return %c0_i32, %arg0 : i32, i32
  }
  func.func @transform_2(%arg0: i32) -> (i32, i32) {
    %c0_i32 = arith.constant 0 : i32
    %c0_i32_0 = arith.constant 0 : i32
    return %c0_i32, %arg0 : i32, i32
  }
  func.func @transform_3(%arg0: i32) -> (i32, i32) {
    %c0_i32 = arith.constant 0 : i32
    %c0_i32_0 = arith.constant 0 : i32
    return %c0_i32, %arg0 : i32, i32
  }
}

</mosaic_0001>

<llo_original>
// kernel: tpu_custom_call.1
$region0: #{tpu_custom_call.1}
  #allocation0 [shape = 'u32[]', space=smem, size = 0x4, offset = 0x4, fixed_abs, tag = 'smem constant byte address 0x4 - core index']
  #allocation1 [shape = 'u32[144,128]{1,0:T(1,128)}', space=vmem, size = 0x12000, scoped, tag = 'internal scratch']
  %s0 = inlined_call_operand.vmem [shape: f32[8,1], index: 0, kind: input, shape index: {}]
  %s1 = inlined_call_operand.hbm [shape: f32[8,256], index: 1, kind: input, shape index: {}]
  %s2 = inlined_call_operand.vmem [shape: f32[8,256], index: 2, kind: input, shape index: {}]
  %s3 = inlined_call_operand.hbm [shape: f32[8,256], index: 3, kind: output, shape index: {}]
  %s4 = sld [smem:[#allocation0]]
  $region26: #{tpu_custom_call.1} parent=0
    _
  %s6 = ssub.s32 1, %s4
  %s7 = scalar_select 0, %s6, %s4
  $region1: #{tpu_custom_call.1} parent=0
    #allocation2 [shape = 'u8[8192]{0}', space=vmem, size = 0x2000, scoped, tag = 'input window, operand 1, single buffered']
    #allocation3 [shape = 's32[1]{0}', space=sflag, size = 0x4, scoped, tag = 'scoped memory for tpu_custom_call.1']
    #allocation4 [shape = 's32[1]{0}', space=sflag, size = 0x4, scoped, tag = 'scoped memory for tpu_custom_call.1']
    #allocation5 [shape = 'u8[8192]{0}', space=vmem, size = 0x2000, scoped, tag = 'output window, operand 0, single buffered']
    %8 = vsyncpa [#allocation3], 0
    %9 = vsyncpa [#allocation4], 0
    // Predicated region
    $region2: #{tpu_custom_call.1} parent=1 // pred_check
      _
    $region3: #{tpu_custom_call.1} parent=1 // pred_check_branch
      %11 = sbr.rel (0) target = $region5
    $region4: #{tpu_custom_call.1} parent=1 // pred_region
      _
    $region5: #{tpu_custom_call.1} parent=1 // pred_fallthru
      _
    // Predicated region
    $region6: #{tpu_custom_call.1} parent=1 // pred_check
      _
    $region7: #{tpu_custom_call.1} parent=1 // pred_check_branch
      %13 = sbr.rel (0) target = $region9
    $region8: #{tpu_custom_call.1} parent=1 // pred_region
      %s15 = ssub.s32 256, 256
      %16 = vsyncadd [#allocation3], %s15
      %s18 = sshll.u32 [#allocation2], 4
      %s19 = int_to_ptr.vmem [resolvable:$true] %s18
      %21 = dma.hbm_to_vmem [thread:$0]  %s1, 256, %s19, [#allocation3]
    $region9: #{tpu_custom_call.1} parent=1 // pred_fallthru
      _
    // Predicated region
    $region10: #{tpu_custom_call.1} parent=1 // pred_check
      _
    $region11: #{tpu_custom_call.1} parent=1 // pred_check_branch
      %23 = sbr.rel (0) target = $region13
    $region12: #{tpu_custom_call.1} parent=1 // pred_region
      _
    $region13: #{tpu_custom_call.1} parent=1 // pred_fallthru
      _
    // Predicated region
    $region14: #{tpu_custom_call.1} parent=1 // pred_check
      _
    $region15: #{tpu_custom_call.1} parent=1 // pred_check_branch
      %25 = sbr.rel (0) target = $region17
    $region16: #{tpu_custom_call.1} parent=1 // pred_region
      %26 = dma.done [#allocation3], 256
    $region17: #{tpu_custom_call.1} parent=1 // pred_fallthru
      _
    %v27 = vld [vmem:[%s2] sm:$0xff]
    %v28 = vld [vmem:[%s2 + $0x8] sm:$0xff]
    %v29 = vld [vmem:[%s0] sm:$0xff]
    %31 = vset.pattern.permute.xlu0 0
    %32 = vperm.xlu0 %31, %v29
    %v33 = vpop.permute.xlu0 %32
    %v35 = vmul.f32 %v27, %v33
    %v36 = vmul.f32 %v28, %v33
    %v37 = vld [vmem:[#allocation2] sm:$0xff]
    %v38 = vld [vmem:[#allocation2 + $0x8] sm:$0xff]
    %v39 = vadd.f32 %v35, %v37
    %v40 = vadd.f32 %v36, %v38
    %41 = vst [vmem:[#allocation5] sm:$0xff] %v39
    %42 = vst [vmem:[#allocation5 + $0x8] sm:$0xff] %v40
    // Predicated region
    $region18: #{tpu_custom_call.1} parent=1 // pred_check
      _
    $region19: #{tpu_custom_call.1} parent=1 // pred_check_branch
      %44 = sbr.rel (0) target = $region21
    $region20: #{tpu_custom_call.1} parent=1 // pred_region
      %s46 = ssub.s32 256, 256
      %47 = vsyncadd [#allocation4], %s46
      %s49 = sshll.u32 [#allocation5], 4
      %s50 = int_to_ptr.vmem [resolvable:$true] %s49
      %52 = dma.vmem_to_hbm [thread:$0]  %s50, 256, %s3, [#allocation4]
    $region21: #{tpu_custom_call.1} parent=1 // pred_fallthru
      _
    // Predicated region
    $region22: #{tpu_custom_call.1} parent=1 // pred_check
      _
    $region23: #{tpu_custom_call.1} parent=1 // pred_check_branch
      %54 = sbr.rel (0) target = $region25
    $region24: #{tpu_custom_call.1} parent=1 // pred_region
      %55 = dma.done [#allocation4], 256
    $region25: #{tpu_custom_call.1} parent=1 // pred_fallthru
      _
    %56 = vsyncpa [#allocation3], 1
    %57 = vsyncpa [#allocation4], 1

</llo_original>
